<compile_context>
chip_gen: v5e
topology: v5e:2x2
jax: 0.10.0
libtpu: 0.0.40
codegen_flags: <defaults>
</compile_context>

<pallas_src>
import math

import jax
import jax.numpy as jnp
from jax.experimental import pallas as pl
from jax.experimental.pallas import tpu as pltpu


def _round_up(x, m):
    return ((x + m - 1) // m) * m


def _bnn_kernel(x_ref, w_ref, b_ref, o_ref):
    # x arrives as f32; cast to the weight dtype on the VPU (hidden under the
    # x DMA), then a pure MXU matmul with f32 accumulation + bias add.
    x = x_ref[...].astype(w_ref.dtype)
    acc = jnp.dot(x, w_ref[...], preferred_element_type=jnp.float32) + b_ref[...]
    o_ref[...] = acc.astype(o_ref.dtype)


def prepare_params(w, b, compute_dtype=jnp.bfloat16):
    """One-time host-side parameter transform.

    Folds the (2x - 1) input rescale into the linear layer:
        (2x - 1) @ W + b == x @ (2W) + (b - sum(W, axis=0))
    and pads the class dim up to a multiple of 128 lanes (and the feature dim
    to a multiple of 128 with zero rows, harmless because padded x columns
    are zero).
    Returns (w_padded[Dpad, Npad] in compute_dtype, b_padded[1, Npad] f32, N).
    """
    D, N = w.shape
    w_f = jnp.asarray(w, jnp.float32)
    b_f = jnp.asarray(b, jnp.float32)

    w_folded = 2.0 * w_f
    b_folded = b_f - jnp.sum(w_f, axis=0)

    d_pad = _round_up(D, 128)
    n_pad = _round_up(N, 128)
    w_p = (
        jnp.zeros((d_pad, n_pad), jnp.float32).at[:D, :N].set(w_folded)
    ).astype(compute_dtype)
    b_p = jnp.zeros((1, n_pad), jnp.float32).at[:, :N].set(b_folded[None, :])
    return w_p, b_p, N


def mnist_bnn_forward(x_nchw, w_p, b_p, n_classes, *, block_b=1024):
    """x_nchw: (B, C, H, W) f32; w_p: (Dpad, Npad) folded/padded; b_p: (1, Npad).

    Returns (B, n_classes) bf16 logits, mathematically equal (up to bf16
    quantization of x/W/logits, f32 accumulation) to
    (2*x.view(B,-1) - 1) @ W + b.
    """
    B = x_nchw.shape[0]
    D = math.prod(x_nchw.shape[1:])
    d_pad, n_pad = w_p.shape
    assert d_pad >= D and d_pad % 128 == 0 and n_pad % 128 == 0

    # Glue: PyTorch .view(B, -1) on NCHW == row-major reshape (free bitcast).
    x2d = x_nchw.reshape(B, D)
    if d_pad != D:
        # TODO(synk): one-time column pad; in deployment pad upstream so the
        # hot x stream stays lane-dense without this extra pass.
        x2d = jnp.pad(x2d, ((0, 0), (0, d_pad - D)))

    # Batch tile: multiple of 8 sublanes, capped at block_b, and for B > 8
    # capped at ceil(B/2) so the "parallel" grid axis has >=2 steps (keeps
    # v7x's second TensorCore busy on this memory-bound kernel).
    bm = min(block_b, _round_up(B, 8))
    if B > 8:
        bm = min(bm, _round_up(pl.cdiv(B, 2), 8))
    bm = max(8, _round_up(bm, 8))

    # v5e-safe VMEM cap (16 MiB scoped default): x double-buffered (f32) +
    # out double-buffered (bf16) + W/bias single-buffered, with slack.
    vmem_budget = 14 * 1024 * 1024
    per_row = 2 * d_pad * 4 + 2 * n_pad * 2
    fixed = d_pad * n_pad * 2 + n_pad * 4
    max_bm = max(8, ((vmem_budget - fixed) // per_row) // 8 * 8)
    bm = min(bm, max_bm)

    grid = (pl.cdiv(B, bm),)  # partial trailing tile handled by Pallas, no host pad

    cost = pl.CostEstimate(
        flops=2 * B * d_pad * n_pad,
        transcendentals=0,
        bytes_accessed=B * d_pad * 4      # x stream (f32, dominant)
        + d_pad * n_pad * 2               # W (bf16, resident)
        + n_pad * 4                       # bias (f32)
        + B * n_pad * 2,                  # logits writeback (bf16)
    )

    out = pl.pallas_call(
        _bnn_kernel,
        out_shape=jax.ShapeDtypeStruct((B, n_pad), jnp.bfloat16),
        grid=grid,
        in_specs=[
            pl.BlockSpec((bm, d_pad), lambda i: (i, 0)),         # x streams over B
            pl.BlockSpec((d_pad, n_pad), lambda i: (0, 0),       # W resident,
                         pipeline_mode=pl.Buffered(1)),          #   single-buffered
            pl.BlockSpec((1, n_pad), lambda i: (0, 0),           # bias resident,
                         pipeline_mode=pl.Buffered(1)),          #   single-buffered
        ],
        out_specs=pl.BlockSpec((bm, n_pad), lambda i: (i, 0)),
        compiler_params=pltpu.CompilerParams(
            dimension_semantics=("parallel",),
        ),
        cost_estimate=cost,
    )(x2d, w_p, b_p)

    return out[:, :n_classes]


def reference_forward(x_nchw, w, b):
    """Exact f32 reference of the PyTorch module forward."""
    x2d = x_nchw.reshape(x_nchw.shape[0], -1).astype(jnp.float32)
    xs = 2.0 * x2d - 1.0
    return xs @ w.astype(jnp.float32) + b.astype(jnp.float32)[None, :]


if __name__ == "__main__":
    key = jax.random.PRNGKey(0)
    kx, kw, kb = jax.random.split(key, 3)

    # Small shapes consistent with the module's forward (NCHW image input).
    B, C, H, W = 2, 4, 16, 16
    D = C * H * W          # 1024 flattened features
    N = 10                 # MNIST classes

    x = jax.random.uniform(kx, (B, C, H, W), dtype=jnp.float32)
    w = jax.random.normal(kw, (D, N), dtype=jnp.float32) * 0.05
    b = jax.random.normal(kb, (N,), dtype=jnp.float32) * 0.1

    w_p, b_p, n_classes = prepare_params(w, b)   # one-time host transform
    out = mnist_bnn_forward(x, w_p, b_p, n_classes)
    out = jax.block_until_ready(out)

    assert out.shape == (B, N)
    out_f32 = out.astype(jnp.float32)

    # 1) Against the exact f32 PyTorch semantics — tolerance sized for the
    #    bf16 quantization of streamed x / W / logits (accumulation is f32).
    ref_f32 = reference_forward(x, w, b)
    assert jnp.allclose(out_f32, ref_f32, atol=5e-2, rtol=5e-2), (
        "mismatch vs f32 reference"
    )

    # 2) Against a plain-JAX reference that follows the same numeric path
    #    (bf16 x/W, f32 accumulation, bf16 logits) — tighter tolerance.
    x2d_bf16 = x.reshape(B, D).astype(w_p.dtype)
    ref_same_path = (
        jnp.dot(x2d_bf16, w_p, preferred_element_type=jnp.float32) + b_p
    ).astype(jnp.bfloat16)[:, :n_classes].astype(jnp.float32)
    assert jnp.allclose(out_f32, ref_same_path, atol=3e-2, rtol=3e-2), (
        "mismatch vs bf16-path reference"
    )

    print("KERNEL_OK")
</pallas_src>

<mosaic_0001>
module attributes {stable_mosaic.version = 11 : i64} {
  func.func @_bnn_kernel(%arg0: i32, %arg1: memref<8x1024xf32, #tpu.memory_space<vmem>>, %arg2: memref<1024x128xbf16, #tpu.memory_space<vmem>>, %arg3: memref<1x128xf32, #tpu.memory_space<vmem>>, %arg4: memref<8x128xbf16, #tpu.memory_space<vmem>>) attributes {dimension_semantics = [#tpu.dimension_semantics<parallel>], iteration_bounds = array<i64: 1>, scalar_prefetch = 0 : i64, scratch_operands = 0 : i64, tpu.core_type = #tpu.core_type<tc>, window_params = [{transform_indices = @transform_0, window_bounds = array<i64: 8, 1024>}, {pipeline_mode = #tpu.pipeline_mode<synchronous>, transform_indices = @transform_1, window_bounds = array<i64: 1024, 128>}, {pipeline_mode = #tpu.pipeline_mode<synchronous>, transform_indices = @transform_2, window_bounds = array<i64: 1, 128>}, {transform_indices = @transform_3, window_bounds = array<i64: 8, 128>}]} {
    %c0 = arith.constant 0 : index
    %c0_0 = arith.constant 0 : index
    %0 = vector.load %arg1[%c0, %c0_0] : memref<8x1024xf32, #tpu.memory_space<vmem>>, vector<8x1024xf32>
    %1 = arith.truncf %0 : vector<8x1024xf32> to vector<8x1024xbf16>
    %c0_1 = arith.constant 0 : index
    %c0_2 = arith.constant 0 : index
    %2 = vector.load %arg2[%c0_1, %c0_2] : memref<1024x128xbf16, #tpu.memory_space<vmem>>, vector<1024x128xbf16>
    %cst = arith.constant dense<0.000000e+00> : vector<8x128xf32>
    %3 = tpu.matmul %1, %2, %cst {dimension_numbers = #tpu.dot_dimension_numbers<[1], [0], [0], [1], [0, 0, 1, 1], [], []>} : vector<8x1024xbf16>, vector<1024x128xbf16>, vector<8x128xf32> -> vector<8x128xf32>
    %c0_3 = arith.constant 0 : index
    %c0_4 = arith.constant 0 : index
    %4 = vector.load %arg3[%c0_3, %c0_4] : memref<1x128xf32, #tpu.memory_space<vmem>>, vector<1x128xf32>
    %5 = vector.broadcast %4 : vector<1x128xf32> to vector<8x128xf32>
    %6 = arith.addf %3, %5 : vector<8x128xf32>
    %7 = arith.truncf %6 : vector<8x128xf32> to vector<8x128xbf16>
    %c0_5 = arith.constant 0 : index
    %c0_6 = arith.constant 0 : index
    %8 = vector.load %arg4[%c0_5, %c0_6] : memref<8x128xbf16, #tpu.memory_space<vmem>>, vector<8x128xbf16>
    tpu.vector_store %arg4[%c0_5, %c0_6], %7 {strides = array<i32>} : memref<8x128xbf16, #tpu.memory_space<vmem>>, vector<8x128xbf16>,
    return
  }
  func.func @transform_0(%arg0: i32) -> (i32, i32) {
    %c0_i32 = arith.constant 0 : i32
    %c0_i32_0 = arith.constant 0 : i32
    return %arg0, %c0_i32 : i32, i32
  }
  func.func @transform_1(%arg0: i32) -> (i32, i32) {
    %c0_i32 = arith.constant 0 : i32
    %c0_i32_0 = arith.constant 0 : i32
    %c0_i32_1 = arith.constant 0 : i32
    return %c0_i32, %c0_i32_0 : i32, i32
  }
  func.func @transform_2(%arg0: i32) -> (i32, i32) {
    %c0_i32 = arith.constant 0 : i32
    %c0_i32_0 = arith.constant 0 : i32
    %c0_i32_1 = arith.constant 0 : i32
    return %c0_i32, %c0_i32_0 : i32, i32
  }
  func.func @transform_3(%arg0: i32) -> (i32, i32) {
    %c0_i32 = arith.constant 0 : i32
    %c0_i32_0 = arith.constant 0 : i32
    return %arg0, %c0_i32 : i32, i32
  }
}

</mosaic_0001>

<llo_original>
// kernel: tpu_custom_call.1
$region0: #{tpu_custom_call.1}
  #allocation0 [shape = 'u32[]', space=smem, size = 0x4, offset = 0x4, fixed_abs, tag = 'smem constant byte address 0x4 - core index']
  #allocation1 [shape = 'u32[72,128]{1,0:T(1,128)}', space=vmem, size = 0x9000, scoped, tag = 'internal scratch']
  %s0 = inlined_call_operand.hbm [shape: f32[2,1024], index: 0, kind: input, shape index: {}]
  %s1 = inlined_call_operand.hbm [shape: bf16[1024,128], index: 1, kind: input, shape index: {}]
  %s2 = inlined_call_operand.vmem [shape: f32[1,128], index: 2, kind: input, shape index: {}]
  %s3 = inlined_call_operand.hbm [shape: bf16[2,128], index: 3, kind: output, shape index: {}]
  %s4 = sld [smem:[#allocation0]]
  $region30: #{tpu_custom_call.1} parent=0
    _
  %s6 = ssub.s32 1, %s4
  %s7 = scalar_select 0, %s6, %s4
  $region1: #{tpu_custom_call.1} parent=0
    #allocation2 [shape = 'u8[32768]{0}', space=vmem, size = 0x8000, scoped, tag = 'input window, operand 0, single buffered']
    #allocation3 [shape = 's32[1]{0}', space=sflag, size = 0x4, scoped, tag = 'scoped memory for tpu_custom_call.1']
    #allocation4 [shape = 's32[1]{0}', space=sflag, size = 0x4, scoped, tag = 'scoped memory for tpu_custom_call.1']
    #allocation5 [shape = 'u8[262144]{0}', space=vmem, size = 0x40000, scoped, tag = 'input window, operand 1, single buffered']
    #allocation6 [shape = 's32[1]{0}', space=sflag, size = 0x4, scoped, tag = 'scoped memory for tpu_custom_call.1']
    #allocation7 [shape = 'u8[2048]{0}', space=vmem, size = 0x800, scoped, tag = 'output window, operand 0, single buffered']
    %8 = vsyncpa [#allocation3], 0
    %9 = vsyncpa [#allocation6], 0
    %10 = vsyncpa [#allocation4], 0
    // Predicated region
    $region2: #{tpu_custom_call.1} parent=1 // pred_check
      _
    $region3: #{tpu_custom_call.1} parent=1 // pred_check_branch
      %12 = sbr.rel (0) target = $region5
    $region4: #{tpu_custom_call.1} parent=1 // pred_region
      %14 = vsyncadd [#allocation3], 768
      %s15 = sshll.u32 %s0, 4
      %s16 = int_to_ptr.hbm [resolvable:$true] %s15
      %s17 = sshll.u32 [#allocation2], 4
      %s18 = int_to_ptr.vmem [resolvable:$true] %s17
      %23 = dma.hbm_to_vmem [thread:$0]  %s16, 256, %s18, [#allocation3], 256, 256, 16
    $region5: #{tpu_custom_call.1} parent=1 // pred_fallthru
      _
    // Predicated region
    $region6: #{tpu_custom_call.1} parent=1 // pred_check
      _
    $region7: #{tpu_custom_call.1} parent=1 // pred_check_branch
      %25 = sbr.rel (0) target = $region9
    $region8: #{tpu_custom_call.1} parent=1 // pred_region
      %27 = vsyncadd [#allocation6], 0
      %s28 = sshll.u32 %s1, 4
      %s29 = int_to_ptr.hbm [resolvable:$true] %s28
      %s30 = sshll.u32 [#allocation5], 4
      %s31 = int_to_ptr.vmem [resolvable:$true] %s30
      %36 = dma.hbm_to_vmem [thread:$0]  %s29, 8192, %s31, [#allocation6], 64, 64, 4
    $region9: #{tpu_custom_call.1} parent=1 // pred_fallthru
      _
    // Predicated region
    $region10: #{tpu_custom_call.1} parent=1 // pred_check
      _
    $region11: #{tpu_custom_call.1} parent=1 // pred_check_branch
      %38 = sbr.rel (0) target = $region13
    $region12: #{tpu_custom_call.1} parent=1 // pred_region
      _
    $region13: #{tpu_custom_call.1} parent=1 // pred_fallthru
      _
    // Predicated region
    $region14: #{tpu_custom_call.1} parent=1 // pred_check
      _
    $region15: #{tpu_custom_call.1} parent=1 // pred_check_branch
      %40 = sbr.rel (0) target = $region17
    $region16: #{tpu_custom_call.1} parent=1 // pred_region
      %42 = dma.done [#allocation3], 1024
    $region17: #{tpu_custom_call.1} parent=1 // pred_fallthru
      _
    // Predicated region
    $region18: #{tpu_custom_call.1} parent=1 // pred_check
      _
    $region19: #{tpu_custom_call.1} parent=1 // pred_check_branch
      %44 = sbr.rel (0) target = $region21
    $region20: #{tpu_custom_call.1} parent=1 // pred_region
      %46 = dma.done [#allocation6], 8192
    $region21: #{tpu_custom_call.1} parent=1 // pred_fallthru
      _
    %v47 = vld [vmem:[#allocation2] sm:$0xff]
    %v48 = vld [vmem:[#allocation2 + $0x8] sm:$0xff]
    %v49 = vld [vmem:[#allocation2 + $0x10] sm:$0xff]
    %v50 = vld [vmem:[#allocation2 + $0x18] sm:$0xff]
    %v51 = vld [vmem:[#allocation2 + $0x20] sm:$0xff]
    %v52 = vld [vmem:[#allocation2 + $0x28] sm:$0xff]
    %v53 = vld [vmem:[#allocation2 + $0x30] sm:$0xff]
    %v54 = vld [vmem:[#allocation2 + $0x38] sm:$0xff]
    %63 = vst [vmem:[#allocation1] ss:$4 sm:$0xff] %v47
    %s64 = scalar_lea.vmem [#allocation1], 1
    %65 = vst [vmem:[%s64] ss:$4 sm:$0xff] %v49
    %s66 = scalar_lea.vmem [#allocation1], 2
    %67 = vst [vmem:[%s66] ss:$4 sm:$0xff] %v51
    %s68 = scalar_lea.vmem [#allocation1], 3
    %69 = vst [vmem:[%s68] ss:$4 sm:$0xff] %v53
    %s70 = scalar_lea.vmem [#allocation1], 32
    %71 = vst [vmem:[%s70] ss:$4 sm:$0xff] %v48
    %s72 = scalar_lea.vmem [#allocation1], 33
    %73 = vst [vmem:[%s72] ss:$4 sm:$0xff] %v50
    %s74 = scalar_lea.vmem [#allocation1], 34
    %75 = vst [vmem:[%s74] ss:$4 sm:$0xff] %v52
    %s76 = scalar_lea.vmem [#allocation1], 35
    %77 = vst [vmem:[%s76] ss:$4 sm:$0xff] %v54
    %v78 = vld.sshfl [vmem:[#allocation1] sm:$0xff pattern:$0x73625140]
    %v79 = vld.sshfl [vmem:[#allocation1 + $0x8] sm:$0xff pattern:$0x73625140]
    %v80 = vld.sshfl [vmem:[#allocation1 + $0x10] sm:$0xff pattern:$0x73625140]
    %v81 = vld.sshfl [vmem:[#allocation1 + $0x18] sm:$0xff pattern:$0x73625140]
    %v82 = vld.sshfl [vmem:[#allocation1 + $0x20] sm:$0xff pattern:$0x73625140]
    %v83 = vld.sshfl [vmem:[#allocation1 + $0x28] sm:$0xff pattern:$0x73625140]
    %v84 = vld.sshfl [vmem:[#allocation1 + $0x30] sm:$0xff pattern:$0x73625140]
    %v85 = vld.sshfl [vmem:[#allocation1 + $0x38] sm:$0xff pattern:$0x73625140]
    %v94 = vpack.c.bf16 %v78, %v78
    %v95 = vpack.c.bf16 %v79, %v79
    %v96 = vpack.c.bf16 %v80, %v80
    %v97 = vpack.c.bf16 %v81, %v81
    %v98 = vpack.c.bf16 %v82, %v82
    %v99 = vpack.c.bf16 %v83, %v83
    %v100 = vpack.c.bf16 %v84, %v84
    %v101 = vpack.c.bf16 %v85, %v85
    %v102 = vld [vmem:[#allocation5] sm:$0xf]
    %v103 = vld [vmem:[#allocation5 + $0x4] sm:$0xf]
    %v104 = vld [vmem:[#allocation5 + $0x8] sm:$0xf]
    %v105 = vld [vmem:[#allocation5 + $0xc] sm:$0xf]
    %v106 = vld [vmem:[#allocation5 + $0x10] sm:$0xf]
    %v107 = vld [vmem:[#allocation5 + $0x14] sm:$0xf]
    %v108 = vld [vmem:[#allocation5 + $0x18] sm:$0xf]
    %v109 = vld [vmem:[#allocation5 + $0x1c] sm:$0xf]
    %v110 = vld [vmem:[#allocation5 + $0x20] sm:$0xf]
    %v111 = vld [vmem:[#allocation5 + $0x24] sm:$0xf]
    %v112 = vld [vmem:[#allocation5 + $0x28] sm:$0xf]
    %v113 = vld [vmem:[#allocation5 + $0x2c] sm:$0xf]
    %v114 = vld [vmem:[#allocation5 + $0x30] sm:$0xf]
    %v115 = vld [vmem:[#allocation5 + $0x34] sm:$0xf]
    %v116 = vld [vmem:[#allocation5 + $0x38] sm:$0xf]
    %v117 = vld [vmem:[#allocation5 + $0x3c] sm:$0xf]
    %v118 = vld [vmem:[#allocation5 + $0x40] sm:$0xf]
    %v119 = vld [vmem:[#allocation5 + $0x44] sm:$0xf]
    %v120 = vld [vmem:[#allocation5 + $0x48] sm:$0xf]
    %v121 = vld [vmem:[#allocation5 + $0x4c] sm:$0xf]
    %v122 = vld [vmem:[#allocation5 + $0x50] sm:$0xf]
    %v123 = vld [vmem:[#allocation5 + $0x54] sm:$0xf]
    %v124 = vld [vmem:[#allocation5 + $0x58] sm:$0xf]
    %v125 = vld [vmem:[#allocation5 + $0x5c] sm:$0xf]
    %v126 = vld [vmem:[#allocation5 + $0x60] sm:$0xf]
    %v127 = vld [vmem:[#allocation5 + $0x64] sm:$0xf]
    %v128 = vld [vmem:[#allocation5 + $0x68] sm:$0xf]
    %v129 = vld [vmem:[#allocation5 + $0x6c] sm:$0xf]
    %v130 = vld [vmem:[#allocation5 + $0x70] sm:$0xf]
    %v131 = vld [vmem:[#allocation5 + $0x74] sm:$0xf]
    %v132 = vld [vmem:[#allocation5 + $0x78] sm:$0xf]
    %v133 = vld [vmem:[#allocation5 + $0x7c] sm:$0xf]
    %v134 = vld [vmem:[#allocation5 + $0x80] sm:$0xf]
    %v135 = vld [vmem:[#allocation5 + $0x84] sm:$0xf]
    %v136 = vld [vmem:[#allocation5 + $0x88] sm:$0xf]
    %v137 = vld [vmem:[#allocation5 + $0x8c] sm:$0xf]
    %v138 = vld [vmem:[#allocation5 + $0x90] sm:$0xf]
    %v139 = vld [vmem:[#allocation5 + $0x94] sm:$0xf]
    %v140 = vld [vmem:[#allocation5 + $0x98] sm:$0xf]
    %v141 = vld [vmem:[#allocation5 + $0x9c] sm:$0xf]
    %v142 = vld [vmem:[#allocation5 + $0xa0] sm:$0xf]
    %v143 = vld [vmem:[#allocation5 + $0xa4] sm:$0xf]
    %v144 = vld [vmem:[#allocation5 + $0xa8] sm:$0xf]
    %v145 = vld [vmem:[#allocation5 + $0xac] sm:$0xf]
    %v146 = vld [vmem:[#allocation5 + $0xb0] sm:$0xf]
    %v147 = vld [vmem:[#allocation5 + $0xb4] sm:$0xf]
    %v148 = vld [vmem:[#allocation5 + $0xb8] sm:$0xf]
    %v149 = vld [vmem:[#allocation5 + $0xbc] sm:$0xf]
    %v150 = vld [vmem:[#allocation5 + $0xc0] sm:$0xf]
    %v151 = vld [vmem:[#allocation5 + $0xc4] sm:$0xf]
    %v152 = vld [vmem:[#allocation5 + $0xc8] sm:$0xf]
    %v153 = vld [vmem:[#allocation5 + $0xcc] sm:$0xf]
    %v154 = vld [vmem:[#allocation5 + $0xd0] sm:$0xf]
    %v155 = vld [vmem:[#allocation5 + $0xd4] sm:$0xf]
    %v156 = vld [vmem:[#allocation5 + $0xd8] sm:$0xf]
    %v157 = vld [vmem:[#allocation5 + $0xdc] sm:$0xf]
    %v158 = vld [vmem:[#allocation5 + $0xe0] sm:$0xf]
    %v159 = vld [vmem:[#allocation5 + $0xe4] sm:$0xf]
    %v160 = vld [vmem:[#allocation5 + $0xe8] sm:$0xf]
    %v161 = vld [vmem:[#allocation5 + $0xec] sm:$0xf]
    %v162 = vld [vmem:[#allocation5 + $0xf0] sm:$0xf]
    %v163 = vld [vmem:[#allocation5 + $0xf4] sm:$0xf]
    %v164 = vld [vmem:[#allocation5 + $0xf8] sm:$0xf]
    %v165 = vld [vmem:[#allocation5 + $0xfc] sm:$0xf]
    %v166 = vld [vmem:[#allocation5 + $0x100] sm:$0xf]
    %v167 = vld [vmem:[#allocation5 + $0x104] sm:$0xf]
    %v168 = vld [vmem:[#allocation5 + $0x108] sm:$0xf]
    %v169 = vld [vmem:[#allocation5 + $0x10c] sm:$0xf]
    %v170 = vld [vmem:[#allocation5 + $0x110] sm:$0xf]
    %v171 = vld [vmem:[#allocation5 + $0x114] sm:$0xf]
    %v172 = vld [vmem:[#allocation5 + $0x118] sm:$0xf]
    %v173 = vld [vmem:[#allocation5 + $0x11c] sm:$0xf]
    %v174 = vld [vmem:[#allocation5 + $0x120] sm:$0xf]
    %v175 = vld [vmem:[#allocation5 + $0x124] sm:$0xf]
    %v176 = vld [vmem:[#allocation5 + $0x128] sm:$0xf]
    %v177 = vld [vmem:[#allocation5 + $0x12c] sm:$0xf]
    %v178 = vld [vmem:[#allocation5 + $0x130] sm:$0xf]
    %v179 = vld [vmem:[#allocation5 + $0x134] sm:$0xf]
    %v180 = vld [vmem:[#allocation5 + $0x138] sm:$0xf]
    %v181 = vld [vmem:[#allocation5 + $0x13c] sm:$0xf]
    %v182 = vld [vmem:[#allocation5 + $0x140] sm:$0xf]
    %v183 = vld [vmem:[#allocation5 + $0x144] sm:$0xf]
    %v184 = vld [vmem:[#allocation5 + $0x148] sm:$0xf]
    %v185 = vld [vmem:[#allocation5 + $0x14c] sm:$0xf]
    %v186 = vld [vmem:[#allocation5 + $0x150] sm:$0xf]
    %v187 = vld [vmem:[#allocation5 + $0x154] sm:$0xf]
    %v188 = vld [vmem:[#allocation5 + $0x158] sm:$0xf]
    %v189 = vld [vmem:[#allocation5 + $0x15c] sm:$0xf]
    %v190 = vld [vmem:[#allocation5 + $0x160] sm:$0xf]
    %v191 = vld [vmem:[#allocation5 + $0x164] sm:$0xf]
    %v192 = vld [vmem:[#allocation5 + $0x168] sm:$0xf]
    %v193 = vld [vmem:[#allocation5 + $0x16c] sm:$0xf]
    %v194 = vld [vmem:[#allocation5 + $0x170] sm:$0xf]
    %v195 = vld [vmem:[#allocation5 + $0x174] sm:$0xf]
    %v196 = vld [vmem:[#allocation5 + $0x178] sm:$0xf]
    %v197 = vld [vmem:[#allocation5 + $0x17c] sm:$0xf]
    %v198 = vld [vmem:[#allocation5 + $0x180] sm:$0xf]
    %v199 = vld [vmem:[#allocation5 + $0x184] sm:$0xf]
    %v200 = vld [vmem:[#allocation5 + $0x188] sm:$0xf]
    %v201 = vld [vmem:[#allocation5 + $0x18c] sm:$0xf]
    %v202 = vld [vmem:[#allocation5 + $0x190] sm:$0xf]
    %v203 = vld [vmem:[#allocation5 + $0x194] sm:$0xf]
    %v204 = vld [vmem:[#allocation5 + $0x198] sm:$0xf]
    %v205 = vld [vmem:[#allocation5 + $0x19c] sm:$0xf]
    %v206 = vld [vmem:[#allocation5 + $0x1a0] sm:$0xf]
    %v207 = vld [vmem:[#allocation5 + $0x1a4] sm:$0xf]
    %v208 = vld [vmem:[#allocation5 + $0x1a8] sm:$0xf]
    %v209 = vld [vmem:[#allocation5 + $0x1ac] sm:$0xf]
    %v210 = vld [vmem:[#allocation5 + $0x1b0] sm:$0xf]
    %v211 = vld [vmem:[#allocation5 + $0x1b4] sm:$0xf]
    %v212 = vld [vmem:[#allocation5 + $0x1b8] sm:$0xf]
    %v213 = vld [vmem:[#allocation5 + $0x1bc] sm:$0xf]
    %v214 = vld [vmem:[#allocation5 + $0x1c0] sm:$0xf]
    %v215 = vld [vmem:[#allocation5 + $0x1c4] sm:$0xf]
    %v216 = vld [vmem:[#allocation5 + $0x1c8] sm:$0xf]
    %v217 = vld [vmem:[#allocation5 + $0x1cc] sm:$0xf]
    %v218 = vld [vmem:[#allocation5 + $0x1d0] sm:$0xf]
    %v219 = vld [vmem:[#allocation5 + $0x1d4] sm:$0xf]
    %v220 = vld [vmem:[#allocation5 + $0x1d8] sm:$0xf]
    %v221 = vld [vmem:[#allocation5 + $0x1dc] sm:$0xf]
    %v222 = vld [vmem:[#allocation5 + $0x1e0] sm:$0xf]
    %v223 = vld [vmem:[#allocation5 + $0x1e4] sm:$0xf]
    %v224 = vld [vmem:[#allocation5 + $0x1e8] sm:$0xf]
    %v225 = vld [vmem:[#allocation5 + $0x1ec] sm:$0xf]
    %v226 = vld [vmem:[#allocation5 + $0x1f0] sm:$0xf]
    %v227 = vld [vmem:[#allocation5 + $0x1f4] sm:$0xf]
    %v228 = vld [vmem:[#allocation5 + $0x1f8] sm:$0xf]
    %v229 = vld [vmem:[#allocation5 + $0x1fc] sm:$0xf]
    %v230 = vld [vmem:[%s2] sm:$0x1]
    %v232 = vperm.slane %v230, 0
    %v362 = vunpack.c.l.b16 %v102
    %v363 = vunpack.c.l.b16 %v103
    %v364 = vunpack.c.l.b16 %v104
    %v365 = vunpack.c.l.b16 %v105
    %v366 = vunpack.c.l.b16 %v106
    %v367 = vunpack.c.l.b16 %v107
    %v368 = vunpack.c.l.b16 %v108
    %v369 = vunpack.c.l.b16 %v109
    %v370 = vunpack.c.l.b16 %v110
    %v371 = vunpack.c.l.b16 %v111
    %v372 = vunpack.c.l.b16 %v112
    %v373 = vunpack.c.l.b16 %v113
    %v374 = vunpack.c.l.b16 %v114
    %v375 = vunpack.c.l.b16 %v115
    %v376 = vunpack.c.l.b16 %v116
    %v377 = vunpack.c.l.b16 %v117
    %v378 = vunpack.c.l.b16 %v118
    %v379 = vunpack.c.l.b16 %v119
    %v380 = vunpack.c.l.b16 %v120
    %v381 = vunpack.c.l.b16 %v121
    %v382 = vunpack.c.l.b16 %v122
    %v383 = vunpack.c.l.b16 %v123
    %v384 = vunpack.c.l.b16 %v124
    %v385 = vunpack.c.l.b16 %v125
    %v386 = vunpack.c.l.b16 %v126
    %v387 = vunpack.c.l.b16 %v127
    %v388 = vunpack.c.l.b16 %v128
    %v389 = vunpack.c.l.b16 %v129
    %v390 = vunpack.c.l.b16 %v130
    %v391 = vunpack.c.l.b16 %v131
    %v392 = vunpack.c.l.b16 %v132
    %v393 = vunpack.c.l.b16 %v133
    %v394 = vunpack.c.l.b16 %v134
    %v395 = vunpack.c.l.b16 %v135
    %v396 = vunpack.c.l.b16 %v136
    %v397 = vunpack.c.l.b16 %v137
    %v398 = vunpack.c.l.b16 %v138
    %v399 = vunpack.c.l.b16 %v139
    %v400 = vunpack.c.l.b16 %v140
    %v401 = vunpack.c.l.b16 %v141
    %v402 = vunpack.c.l.b16 %v142
    %v403 = vunpack.c.l.b16 %v143
    %v404 = vunpack.c.l.b16 %v144
    %v405 = vunpack.c.l.b16 %v145
    %v406 = vunpack.c.l.b16 %v146
    %v407 = vunpack.c.l.b16 %v147
    %v408 = vunpack.c.l.b16 %v148
    %v409 = vunpack.c.l.b16 %v149
    %v410 = vunpack.c.l.b16 %v150
    %v411 = vunpack.c.l.b16 %v151
    %v412 = vunpack.c.l.b16 %v152
    %v413 = vunpack.c.l.b16 %v153
    %v414 = vunpack.c.l.b16 %v154
    %v415 = vunpack.c.l.b16 %v155
    %v416 = vunpack.c.l.b16 %v156
    %v417 = vunpack.c.l.b16 %v157
    %v418 = vunpack.c.l.b16 %v158
    %v419 = vunpack.c.l.b16 %v159
    %v420 = vunpack.c.l.b16 %v160
    %v421 = vunpack.c.l.b16 %v161
    %v422 = vunpack.c.l.b16 %v162
    %v423 = vunpack.c.l.b16 %v163
    %v424 = vunpack.c.l.b16 %v164
    %v425 = vunpack.c.l.b16 %v165
    %v426 = vunpack.c.l.b16 %v166
    %v427 = vunpack.c.l.b16 %v167
    %v428 = vunpack.c.l.b16 %v168
    %v429 = vunpack.c.l.b16 %v169
    %v430 = vunpack.c.l.b16 %v170
    %v431 = vunpack.c.l.b16 %v171
    %v432 = vunpack.c.l.b16 %v172
    %v433 = vunpack.c.l.b16 %v173
    %v434 = vunpack.c.l.b16 %v174
    %v435 = vunpack.c.l.b16 %v175
    %v436 = vunpack.c.l.b16 %v176
    %v437 = vunpack.c.l.b16 %v177
    %v438 = vunpack.c.l.b16 %v178
    %v439 = vunpack.c.l.b16 %v179
    %v440 = vunpack.c.l.b16 %v180
    %v441 = vunpack.c.l.b16 %v181
    %v442 = vunpack.c.l.b16 %v182
    %v443 = vunpack.c.l.b16 %v183
    %v444 = vunpack.c.l.b16 %v184
    %v445 = vunpack.c.l.b16 %v185
    %v446 = vunpack.c.l.b16 %v186
    %v447 = vunpack.c.l.b16 %v187
    %v448 = vunpack.c.l.b16 %v188
    %v449 = vunpack.c.l.b16 %v189
    %v450 = vunpack.c.l.b16 %v190
    %v451 = vunpack.c.l.b16 %v191
    %v452 = vunpack.c.l.b16 %v192
    %v453 = vunpack.c.l.b16 %v193
    %v454 = vunpack.c.l.b16 %v194
    %v455 = vunpack.c.l.b16 %v195
    %v456 = vunpack.c.l.b16 %v196
    %v457 = vunpack.c.l.b16 %v197
    %v458 = vunpack.c.l.b16 %v198
    %v459 = vunpack.c.l.b16 %v199
    %v460 = vunpack.c.l.b16 %v200
    %v461 = vunpack.c.l.b16 %v201
    %v462 = vunpack.c.l.b16 %v202
    %v463 = vunpack.c.l.b16 %v203
    %v464 = vunpack.c.l.b16 %v204
    %v465 = vunpack.c.l.b16 %v205
    %v466 = vunpack.c.l.b16 %v206
    %v467 = vunpack.c.l.b16 %v207
    %v468 = vunpack.c.l.b16 %v208
    %v469 = vunpack.c.l.b16 %v209
    %v470 = vunpack.c.l.b16 %v210
    %v471 = vunpack.c.l.b16 %v211
    %v472 = vunpack.c.l.b16 %v212
    %v473 = vunpack.c.l.b16 %v213
    %v474 = vunpack.c.l.b16 %v214
    %v475 = vunpack.c.l.b16 %v215
    %v476 = vunpack.c.l.b16 %v216
    %v477 = vunpack.c.l.b16 %v217
    %v478 = vunpack.c.l.b16 %v218
    %v479 = vunpack.c.l.b16 %v219
    %v480 = vunpack.c.l.b16 %v220
    %v481 = vunpack.c.l.b16 %v221
    %v482 = vunpack.c.l.b16 %v222
    %v483 = vunpack.c.l.b16 %v223
    %v484 = vunpack.c.l.b16 %v224
    %v485 = vunpack.c.l.b16 %v225
    %v486 = vunpack.c.l.b16 %v226
    %v487 = vunpack.c.l.b16 %v227
    %v488 = vunpack.c.l.b16 %v228
    %v489 = vunpack.c.l.b16 %v229
    %v490 = vpack.c.b16 %v363, %v362
    %v491 = vpack.c.b16 %v365, %v364
    %v492 = vpack.c.b16 %v367, %v366
    %v493 = vpack.c.b16 %v369, %v368
    %v494 = vpack.c.b16 %v371, %v370
    %v495 = vpack.c.b16 %v373, %v372
    %v496 = vpack.c.b16 %v375, %v374
    %v497 = vpack.c.b16 %v377, %v376
    %v498 = vpack.c.b16 %v379, %v378
    %v499 = vpack.c.b16 %v381, %v380
    %v500 = vpack.c.b16 %v383, %v382
    %v501 = vpack.c.b16 %v385, %v384
    %v502 = vpack.c.b16 %v387, %v386
    %v503 = vpack.c.b16 %v389, %v388
    %v504 = vpack.c.b16 %v391, %v390
    %v505 = vpack.c.b16 %v393, %v392
    %v506 = vpack.c.b16 %v395, %v394
    %v507 = vpack.c.b16 %v397, %v396
    %v508 = vpack.c.b16 %v399, %v398
    %v509 = vpack.c.b16 %v401, %v400
    %v510 = vpack.c.b16 %v403, %v402
    %v511 = vpack.c.b16 %v405, %v404
    %v512 = vpack.c.b16 %v407, %v406
    %v513 = vpack.c.b16 %v409, %v408
    %v514 = vpack.c.b16 %v411, %v410
    %v515 = vpack.c.b16 %v413, %v412
    %v516 = vpack.c.b16 %v415, %v414
    %v517 = vpack.c.b16 %v417, %v416
    %v518 = vpack.c.b16 %v419, %v418
    %v519 = vpack.c.b16 %v421, %v420
    %v520 = vpack.c.b16 %v423, %v422
    %v521 = vpack.c.b16 %v425, %v424
    %v522 = vpack.c.b16 %v427, %v426
    %v523 = vpack.c.b16 %v429, %v428
    %v524 = vpack.c.b16 %v431, %v430
    %v525 = vpack.c.b16 %v433, %v432
    %v526 = vpack.c.b16 %v435, %v434
    %v527 = vpack.c.b16 %v437, %v436
    %v528 = vpack.c.b16 %v439, %v438
    %v529 = vpack.c.b16 %v441, %v440
    %v530 = vpack.c.b16 %v443, %v442
    %v531 = vpack.c.b16 %v445, %v444
    %v532 = vpack.c.b16 %v447, %v446
    %v533 = vpack.c.b16 %v449, %v448
    %v534 = vpack.c.b16 %v451, %v450
    %v535 = vpack.c.b16 %v453, %v452
    %v536 = vpack.c.b16 %v455, %v454
    %v537 = vpack.c.b16 %v457, %v456
    %v538 = vpack.c.b16 %v459, %v458
    %v539 = vpack.c.b16 %v461, %v460
    %v540 = vpack.c.b16 %v463, %v462
    %v541 = vpack.c.b16 %v465, %v464
    %v542 = vpack.c.b16 %v467, %v466
    %v543 = vpack.c.b16 %v469, %v468
    %v544 = vpack.c.b16 %v471, %v470
    %v545 = vpack.c.b16 %v473, %v472
    %v546 = vpack.c.b16 %v475, %v474
    %v547 = vpack.c.b16 %v477, %v476
    %v548 = vpack.c.b16 %v479, %v478
    %v549 = vpack.c.b16 %v481, %v480
    %v550 = vpack.c.b16 %v483, %v482
    %v551 = vpack.c.b16 %v485, %v484
    %v552 = vpack.c.b16 %v487, %v486
    %v553 = vpack.c.b16 %v489, %v488
    %618 = vmatpush.bf16.msra.mxu0 %v497
    %619 = vmatpush.bf16.msra.mxu0 %v496
    %620 = vmatpush.bf16.msra.mxu0 %v495
    %621 = vmatpush.bf16.msra.mxu0 %v494
    %622 = vmatpush.bf16.msra.mxu0 %v493
    %623 = vmatpush.bf16.msra.mxu0 %v492
    %624 = vmatpush.bf16.msra.mxu0 %v491
    %625 = vmatpush.bf16.msra.mxu0 %v490
    %626 = vmatmul.bf16.gmra.mxu0 %v94
    %v627 = vpop.f32.mrf.mxu0
    %v628 = vadd.f32 %v232, %v627
    %v629 = vpop.f32.mrf.mxu0
    %630 = vdwg.mxu0
    %631 = vmatpush.bf16.msra.mxu0 %v505
    %632 = vmatpush.bf16.msra.mxu0 %v504
    %633 = vmatpush.bf16.msra.mxu0 %v503
    %634 = vmatpush.bf16.msra.mxu0 %v502
    %635 = vmatpush.bf16.msra.mxu0 %v501
    %636 = vmatpush.bf16.msra.mxu0 %v500
    %637 = vmatpush.bf16.msra.mxu0 %v499
    %638 = vmatpush.bf16.msra.mxu0 %v498
    %639 = vmatmul.bf16.gmra.mxu0 %v95
    %v640 = vpop.f32.mrf.mxu0
    %v641 = vadd.f32 %v628, %v640
    %v642 = vpop.f32.mrf.mxu0
    %643 = vdwg.mxu0
    %644 = vmatpush.bf16.msra.mxu0 %v513
    %645 = vmatpush.bf16.msra.mxu0 %v512
    %646 = vmatpush.bf16.msra.mxu0 %v511
    %647 = vmatpush.bf16.msra.mxu0 %v510
    %648 = vmatpush.bf16.msra.mxu0 %v509
    %649 = vmatpush.bf16.msra.mxu0 %v508
    %650 = vmatpush.bf16.msra.mxu0 %v507
    %651 = vmatpush.bf16.msra.mxu0 %v506
    %652 = vmatmul.bf16.gmra.mxu0 %v96
    %v653 = vpop.f32.mrf.mxu0
    %v654 = vadd.f32 %v641, %v653
    %v655 = vpop.f32.mrf.mxu0
    %656 = vdwg.mxu0
    %657 = vmatpush.bf16.msra.mxu0 %v521
    %658 = vmatpush.bf16.msra.mxu0 %v520
    %659 = vmatpush.bf16.msra.mxu0 %v519
    %660 = vmatpush.bf16.msra.mxu0 %v518
    %661 = vmatpush.bf16.msra.mxu0 %v517
    %662 = vmatpush.bf16.msra.mxu0 %v516
    %663 = vmatpush.bf16.msra.mxu0 %v515
    %664 = vmatpush.bf16.msra.mxu0 %v514
    %665 = vmatmul.bf16.gmra.mxu0 %v97
    %v666 = vpop.f32.mrf.mxu0
    %v667 = vadd.f32 %v654, %v666
    %v668 = vpop.f32.mrf.mxu0
    %669 = vdwg.mxu0
    %670 = vmatpush.bf16.msra.mxu0 %v529
    %671 = vmatpush.bf16.msra.mxu0 %v528
    %672 = vmatpush.bf16.msra.mxu0 %v527
    %673 = vmatpush.bf16.msra.mxu0 %v526
    %674 = vmatpush.bf16.msra.mxu0 %v525
    %675 = vmatpush.bf16.msra.mxu0 %v524
    %676 = vmatpush.bf16.msra.mxu0 %v523
    %677 = vmatpush.bf16.msra.mxu0 %v522
    %678 = vmatmul.bf16.gmra.mxu0 %v98
    %v679 = vpop.f32.mrf.mxu0
    %v680 = vadd.f32 %v667, %v679
    %v681 = vpop.f32.mrf.mxu0
    %682 = vdwg.mxu0
    %683 = vmatpush.bf16.msra.mxu0 %v537
    %684 = vmatpush.bf16.msra.mxu0 %v536
    %685 = vmatpush.bf16.msra.mxu0 %v535
    %686 = vmatpush.bf16.msra.mxu0 %v534
    %687 = vmatpush.bf16.msra.mxu0 %v533
    %688 = vmatpush.bf16.msra.mxu0 %v532
    %689 = vmatpush.bf16.msra.mxu0 %v531
    %690 = vmatpush.bf16.msra.mxu0 %v530
    %691 = vmatmul.bf16.gmra.mxu0 %v99
    %v692 = vpop.f32.mrf.mxu0
    %v693 = vadd.f32 %v680, %v692
    %v694 = vpop.f32.mrf.mxu0
    %695 = vdwg.mxu0
    %696 = vmatpush.bf16.msra.mxu0 %v545
    %697 = vmatpush.bf16.msra.mxu0 %v544
    %698 = vmatpush.bf16.msra.mxu0 %v543
    %699 = vmatpush.bf16.msra.mxu0 %v542
    %700 = vmatpush.bf16.msra.mxu0 %v541
    %701 = vmatpush.bf16.msra.mxu0 %v540
    %702 = vmatpush.bf16.msra.mxu0 %v539
    %703 = vmatpush.bf16.msra.mxu0 %v538
    %704 = vmatmul.bf16.gmra.mxu0 %v100
    %v705 = vpop.f32.mrf.mxu0
    %v706 = vadd.f32 %v693, %v705
    %v707 = vpop.f32.mrf.mxu0
    %708 = vdwg.mxu0
    %709 = vmatpush.bf16.msra.mxu0 %v553
    %710 = vmatpush.bf16.msra.mxu0 %v552
    %711 = vmatpush.bf16.msra.mxu0 %v551
    %712 = vmatpush.bf16.msra.mxu0 %v550
    %713 = vmatpush.bf16.msra.mxu0 %v549
    %714 = vmatpush.bf16.msra.mxu0 %v548
    %715 = vmatpush.bf16.msra.mxu0 %v547
    %716 = vmatpush.bf16.msra.mxu0 %v546
    %717 = vmatmul.bf16.gmra.mxu0 %v101
    %v718 = vpop.f32.mrf.mxu0
    %v719 = vadd.f32 %v706, %v718
    %v720 = vpop.f32.mrf.mxu0
    %721 = vdwg.mxu0
    %v722 = vpack.c.bf16 %v719, %v719
    %v724 = vrot.slane %v722, 3
    %vm725 = vcmask 1040384
    %v728 = vsel %vm725, %v722, %v724
    %vm729 = vcmask 1041409
    %v730 = vsel %vm729, %v722, %v724
    %v732 = vrot.slane %v730, 1
    %vm733 = vcmask 1042434
    %v734 = vsel %vm733, %v722, %v724
    %v736 = vrot.slane %v734, 2
    %vm737 = vcmask 1043459
    %v738 = vsel %vm737, %v722, %v724
    %v740 = vrot.slane %v738, 3
    %745 = vst [vmem:[#allocation7] sm:$0x1] %v728
    %746 = vst [vmem:[#allocation7 + $0x1] sm:$0x1] %v732
    %747 = vst [vmem:[#allocation7 + $0x2] sm:$0x1] %v736
    %748 = vst [vmem:[#allocation7 + $0x3] sm:$0x1] %v740
    // Predicated region
    $region22: #{tpu_custom_call.1} parent=1 // pred_check
      _
    $region23: #{tpu_custom_call.1} parent=1 // pred_check_branch
      %750 = sbr.rel (0) target = $region25
    $region24: #{tpu_custom_call.1} parent=1 // pred_region
      %752 = vsyncadd [#allocation4], 48
      %s753 = sshll.u32 [#allocation7], 4
      %s754 = int_to_ptr.vmem [resolvable:$true] %s753
      %s755 = sshll.u32 %s3, 4
      %s756 = int_to_ptr.hbm [resolvable:$true] %s755
      %761 = dma.vmem_to_hbm [thread:$0]  %s754, 16, %s756, [#allocation4], 16, 16, 1
    $region25: #{tpu_custom_call.1} parent=1 // pred_fallthru
      _
    // Predicated region
    $region26: #{tpu_custom_call.1} parent=1 // pred_check
      _
    $region27: #{tpu_custom_call.1} parent=1 // pred_check_branch
      %763 = sbr.rel (0) target = $region29
    $region28: #{tpu_custom_call.1} parent=1 // pred_region
      %765 = dma.done [#allocation4], 64
    $region29: #{tpu_custom_call.1} parent=1 // pred_fallthru
      _
    %766 = vsyncpa [#allocation3], 1
    %767 = vsyncpa [#allocation6], 1
    %768 = vsyncpa [#allocation4], 1

</llo_original>
